<compile_context>
chip_gen: v7x
topology: tpu7x:2x2x1
jax: 0.10.0
libtpu: 0.0.40
codegen_flags: <defaults>
</compile_context>

<pallas_src>
import jax
import jax.numpy as jnp
from jax.experimental import pallas as pl
from jax.experimental.pallas import tpu as pltpu

# ----------------------------- configuration -------------------------------
VOXEL_SIZE = (1.0, 1.0, 4.0)
LIDAR_RANGE = (-8.0, -8.0, -3.0, 8.0, 8.0, 1.0)
GRID_H, GRID_W = 16, 16          # BEV canvas
MAX_PTS = 8                      # max points per pillar
K_RAW, K_PAD = 10, 16            # PFN input features (padded lane-friendly)
C_VFE = 64                       # PillarVFE output channels
C_BB = 128                       # backbone channels
C_OUT = 128 * 2                  # channels fed to cls / reg heads
ANCHOR_NUM = 2
N_HEADS = 4
D_HEAD = C_BB // N_HEADS
FFN_DIM = 256
H2, W2 = GRID_H // 2, GRID_W // 2
T = H2 * W2                      # tokens per agent
HEAD_N = ANCHOR_NUM + 7 * ANCHOR_NUM     # 16 real head channels
HEAD_N_PAD = 128                          # padded to lane-dense width


# ------------------------------ Pallas kernels ------------------------------
def _pfn_kernel(x_ref, mask_ref, w_ref, b_ref, o_ref):
    """PillarVFE PFN layer: linear (BN folded) + bias + ReLU + masked max."""
    n_pillars, c = o_ref.shape
    pts = x_ref.shape[0] // n_pillars
    y = jnp.dot(x_ref[...], w_ref[...], preferred_element_type=jnp.float32)
    y = jnp.maximum(y + b_ref[...], 0.0)
    y = jnp.where(mask_ref[...] > 0.0, y, -1e9)
    y = jnp.max(y.reshape(n_pillars, pts, c), axis=1)
    # guard: a fully-padded pillar would be -1e9; ReLU outputs are >= 0 so this
    # clamp is a no-op for valid pillars and fixes empty ones.
    o_ref[...] = jnp.maximum(y, 0.0)


def _agent_kernel(p00_ref, p01_ref, p10_ref, p11_ref,
                  cw_ref, cb_ref, pos_ref,
                  wq_ref, bq_ref, wk_ref, bk_ref, wv_ref, bv_ref,
                  wo_ref, pb_ref, l1g_ref, l1b_ref,
                  f1w_ref, f1b_ref, f2w_ref, f2b_ref, l2g_ref, l2b_ref,
                  uw_ref, ub_ref, o_ref):
    """Per-agent fused: 3x3/s2 conv + BN/ReLU + pos + transformer encoder + up-proj."""
    f32, bf16 = jnp.float32, jnp.bfloat16

    # ---- 3x3 stride-2 conv: im2col fused in-kernel via parity-decomposed taps ----
    pvals = (p00_ref[0], p01_ref[0], p10_ref[0], p11_ref[0])   # each [9, 9, C_VFE]
    acc = jnp.zeros((T, C_BB), f32)
    for kh in range(3):
        for kw in range(3):
            pv = pvals[(kh % 2) * 2 + (kw % 2)]
            a, b = kh // 2, kw // 2
            xs = pv[a:a + H2, b:b + W2, :].reshape(T, C_VFE).astype(bf16)
            acc = acc + jnp.dot(xs, cw_ref[kh * 3 + kw],
                                preferred_element_type=f32)
    x = jnp.maximum(acc + cb_ref[...], 0.0) + pos_ref[...]     # [T, C_BB]

    def _ln(v, g, b_):
        mu = jnp.mean(v, axis=-1, keepdims=True)
        var = jnp.mean((v - mu) ** 2, axis=-1, keepdims=True)
        return (v - mu) * jax.lax.rsqrt(var + 1e-5) * g + b_

    # ---- dense multi-head self-attention (deformable-attention stand-in) ----
    sm_scale = 1.0 / (D_HEAD ** 0.5)
    x_bf = x.astype(bf16)
    attn = jnp.zeros((T, C_BB), f32)
    for h in range(N_HEADS):                       # per-head weights: no lane slicing
        qh = jnp.dot(x_bf, wq_ref[h], preferred_element_type=f32) + bq_ref[h]
        kh_ = jnp.dot(x_bf, wk_ref[h], preferred_element_type=f32) + bk_ref[h]
        vh = jnp.dot(x_bf, wv_ref[h], preferred_element_type=f32) + bv_ref[h]
        s = jax.lax.dot_general(qh.astype(bf16), kh_.astype(bf16),
                                (((1,), (1,)), ((), ())),
                                preferred_element_type=f32) * sm_scale
        s = s - jnp.max(s, axis=-1, keepdims=True)
        p = jnp.exp(s)
        p = p * pl.reciprocal(jnp.sum(p, axis=-1, keepdims=True), approx=True)
        oh = jnp.dot(p.astype(bf16), vh.astype(bf16), preferred_element_type=f32)
        attn = attn + jnp.dot(oh.astype(bf16), wo_ref[h], preferred_element_type=f32)
    attn = attn + pb_ref[...]
    x = _ln(x + attn, l1g_ref[...], l1b_ref[...])

    # ---- FFN ----
    h1 = jnp.maximum(
        jnp.dot(x.astype(bf16), f1w_ref[...], preferred_element_type=f32) + f1b_ref[...],
        0.0)
    h2 = jnp.dot(h1.astype(bf16), f2w_ref[...], preferred_element_type=f32) + f2b_ref[...]
    x = _ln(x + h2, l2g_ref[...], l2b_ref[...])

    # ---- channel expansion 128 -> 256 (multi-scale concat stand-in) ----
    out = jnp.maximum(
        jnp.dot(x.astype(bf16), uw_ref[...], preferred_element_type=f32) + ub_ref[...],
        0.0)
    o_ref[0] = out


def _head_kernel(x_ref, w_ref, b_ref, o_ref):
    """Fused cls+reg 1x1 conv (lane-dense, padded to 128 output channels)."""
    y = jnp.dot(x_ref[...].astype(jnp.bfloat16), w_ref[...],
                preferred_element_type=jnp.float32)
    o_ref[...] = y + b_ref[...]


# ------------------------------ wrappers ------------------------------------
def _bcast_spec(shape):
    nd = len(shape)
    return pl.BlockSpec(tuple(shape), lambda i: (0,) * nd)


def pillar_feature_net(feats_flat, mask_flat, w, b, n_pillars):
    return pl.pallas_call(
        _pfn_kernel,
        out_shape=jax.ShapeDtypeStruct((n_pillars, C_VFE), jnp.float32),
    )(feats_flat, mask_flat, w, b)


def fused_backbone_encoder(params, par, n_agents):
    par_spec = pl.BlockSpec((1, H2 + 1, W2 + 1, C_VFE), lambda i: (i, 0, 0, 0))
    weights = [
        params["conv_w"], params["conv_b"], params["pos_emb"],
        params["wq"], params["bq"], params["wk"], params["bk"],
        params["wv"], params["bv"], params["wo"], params["proj_b"],
        params["ln1_g"], params["ln1_b"],
        params["ffn1_w"], params["ffn1_b"], params["ffn2_w"], params["ffn2_b"],
        params["ln2_g"], params["ln2_b"],
        params["up_w"], params["up_b"],
    ]
    w_specs = [_bcast_spec(w.shape) for w in weights]
    return pl.pallas_call(
        _agent_kernel,
        out_shape=jax.ShapeDtypeStruct((n_agents, T, C_OUT), jnp.float32),
        grid=(n_agents,),
        in_specs=[par_spec] * 4 + w_specs,
        out_specs=pl.BlockSpec((1, T, C_OUT), lambda i: (i, 0, 0)),
        compiler_params=pltpu.CompilerParams(dimension_semantics=("parallel",)),
    )(*par, *weights)


def fused_heads(flat, params):
    rows = flat.shape[0]
    return pl.pallas_call(
        _head_kernel,
        out_shape=jax.ShapeDtypeStruct((rows, HEAD_N_PAD), jnp.float32),
    )(flat, params["head_w"], params["head_b"])


# ------------------------------ params --------------------------------------
def init_params(key):
    ks = jax.random.split(key, 16)
    bf = jnp.bfloat16

    def nrm(k, shape, s=0.02):
        return (jax.random.normal(k, shape) * s).astype(jnp.float32)

    p = {}
    # PFN linear 10->64, K padded to 16, BN scale folded into W offline
    pfn_w = jnp.zeros((K_PAD, C_VFE), jnp.float32).at[:K_RAW].set(
        nrm(ks[0], (K_RAW, C_VFE), 0.1))
    pfn_scale = jnp.ones((C_VFE,), jnp.float32)
    p["pfn_w"] = pfn_w * pfn_scale[None, :]
    p["pfn_b"] = jnp.zeros((1, C_VFE), jnp.float32)

    # backbone 3x3/s2 conv, per-tap layout [9, C_in, C_out], BN scale folded in
    conv_w = nrm(ks[1], (9, C_VFE, C_BB), 0.05)
    conv_scale = jnp.ones((C_BB,), jnp.float32)
    p["conv_w"] = (conv_w * conv_scale[None, None, :]).astype(bf)
    p["conv_b"] = jnp.zeros((1, C_BB), jnp.float32)

    p["pos_emb"] = nrm(ks[2], (T, C_BB), 0.02)

    # encoder: per-head Q/K/V/out-proj weights stacked on a leading head axis so
    # the kernel never slices the 128-lane channel dim
    p["wq"] = nrm(ks[3], (N_HEADS, C_BB, D_HEAD)).astype(bf)
    p["bq"] = jnp.zeros((N_HEADS, 1, D_HEAD), jnp.float32)
    p["wk"] = nrm(ks[4], (N_HEADS, C_BB, D_HEAD)).astype(bf)
    p["bk"] = jnp.zeros((N_HEADS, 1, D_HEAD), jnp.float32)
    p["wv"] = nrm(ks[5], (N_HEADS, C_BB, D_HEAD)).astype(bf)
    p["bv"] = jnp.zeros((N_HEADS, 1, D_HEAD), jnp.float32)
    p["wo"] = nrm(ks[6], (N_HEADS, D_HEAD, C_BB)).astype(bf)
    p["proj_b"] = jnp.zeros((1, C_BB), jnp.float32)
    p["ln1_g"] = jnp.ones((1, C_BB), jnp.float32)
    p["ln1_b"] = jnp.zeros((1, C_BB), jnp.float32)
    p["ffn1_w"] = nrm(ks[7], (C_BB, FFN_DIM)).astype(bf)
    p["ffn1_b"] = jnp.zeros((1, FFN_DIM), jnp.float32)
    p["ffn2_w"] = nrm(ks[8], (FFN_DIM, C_BB)).astype(bf)
    p["ffn2_b"] = jnp.zeros((1, C_BB), jnp.float32)
    p["ln2_g"] = jnp.ones((1, C_BB), jnp.float32)
    p["ln2_b"] = jnp.zeros((1, C_BB), jnp.float32)
    p["up_w"] = nrm(ks[9], (C_BB, C_OUT)).astype(bf)
    p["up_b"] = jnp.zeros((1, C_OUT), jnp.float32)

    # cls + reg heads fused into one lane-dense matmul (cols 0:2 cls, 2:16 reg)
    cls_w = nrm(ks[10], (C_OUT, ANCHOR_NUM))
    reg_w = nrm(ks[11], (C_OUT, 7 * ANCHOR_NUM))
    head_w = jnp.zeros((C_OUT, HEAD_N_PAD), jnp.float32)
    head_w = head_w.at[:, :ANCHOR_NUM].set(cls_w)
    head_w = head_w.at[:, ANCHOR_NUM:HEAD_N].set(reg_w)
    p["head_w"] = head_w.astype(bf)
    p["head_b"] = jnp.zeros((1, HEAD_N_PAD), jnp.float32)
    return p


# ------------------------------ forward --------------------------------------
def point_pillar_deform_transformer(params, data_dict):
    vf = data_dict["processed_lidar"]["voxel_features"]      # [M, P, 4]
    vc = data_dict["processed_lidar"]["voxel_coords"]         # [M, 4] int (b, z, y, x)
    vn = data_dict["processed_lidar"]["voxel_num_points"]     # [M]
    record_len = data_dict["record_len"]                      # static python list
    # TODO(synk): pairwise_t_matrix / lidar_pose bilinear feature warping omitted.

    m_vox, p_pts, _ = vf.shape
    vx, vy, vz = VOXEL_SIZE
    x0, y0, z0 = LIDAR_RANGE[0], LIDAR_RANGE[1], LIDAR_RANGE[2]

    # ---------------- PillarVFE feature augmentation (elementwise glue) ------
    mask = (jnp.arange(p_pts)[None, :] < vn[:, None]).astype(jnp.float32)   # [M, P]
    npts = jnp.maximum(vn.astype(jnp.float32), 1.0)[:, None]
    pts_mean = (vf[..., :3] * mask[..., None]).sum(1) / npts                # [M, 3]
    f_cluster = vf[..., :3] - pts_mean[:, None, :]
    fcx = vf[..., 0] - (vc[:, 3].astype(jnp.float32)[:, None] * vx + (vx / 2 + x0))
    fcy = vf[..., 1] - (vc[:, 2].astype(jnp.float32)[:, None] * vy + (vy / 2 + y0))
    fcz = vf[..., 2] - (vc[:, 1].astype(jnp.float32)[:, None] * vz + (vz / 2 + z0))
    f_center = jnp.stack([fcx, fcy, fcz], axis=-1)
    feats = jnp.concatenate(
        [vf, f_cluster, f_center,
         jnp.zeros((m_vox, p_pts, K_PAD - K_RAW), jnp.float32)], axis=-1)
    feats = feats * mask[..., None]                                          # [M, P, 16]
    feats_flat = feats.reshape(m_vox * p_pts, K_PAD)
    mask_flat = mask.reshape(m_vox * p_pts, 1)

    # ---------------- PillarVFE hot path (Pallas kernel 1) -------------------
    pillar_feat = pillar_feature_net(feats_flat, mask_flat,
                                     params["pfn_w"], params["pfn_b"], m_vox)  # [M, 64]

    # ---------------- PointPillarScatter (data-dependent scatter, JAX) -------
    n_agents = int(sum(record_len))
    canvas = jnp.zeros((n_agents, GRID_H * GRID_W, C_VFE), jnp.float32)
    flat_idx = vc[:, 2] * GRID_W + vc[:, 3]
    canvas = canvas.at[vc[:, 0], flat_idx].set(pillar_feat)
    spatial = canvas.reshape(n_agents, GRID_H, GRID_W, C_VFE)               # NHWC

    # parity decomposition of the zero-padded canvas: every 3x3/s2 tap becomes a
    # contiguous 8x8 slice inside the fused kernel (no im2col slab in HBM)
    xpad = jnp.pad(spatial, ((0, 0), (1, 1), (1, 1), (0, 0)))
    par = [xpad[:, r::2, c::2, :] for r in (0, 1) for c in (0, 1)]          # 4x [N,9,9,64]

    # ---------------- fused conv + transformer encoder + up-proj (kernel 2) --
    enc = fused_backbone_encoder(params, par, n_agents)                     # [N, T, 256]
    enc = enc.reshape(n_agents, H2, W2, C_OUT)

    # max-fuse agents per sample according to record_len (JAX glue)
    fused, off = [], 0
    for r in record_len:
        fused.append(jnp.max(enc[off:off + r], axis=0))
        off += r
    spatial_features_2d = jnp.stack(fused, axis=0)                          # [B, 8, 8, 256]

    # ---------------- fused cls/reg heads (Pallas kernel 3) ------------------
    b = spatial_features_2d.shape[0]
    flat = spatial_features_2d.reshape(b * H2 * W2, C_OUT)
    heads = fused_heads(flat, params).reshape(b, H2, W2, HEAD_N_PAD)
    psm = heads[..., :ANCHOR_NUM]
    rm = heads[..., ANCHOR_NUM:HEAD_N]

    # return in NCHW to match the PyTorch convention
    return {"psm": psm.transpose(0, 3, 1, 2), "rm": rm.transpose(0, 3, 1, 2)}


# ------------------------------- main ---------------------------------------
if __name__ == "__main__":
    key = jax.random.PRNGKey(0)
    k_param, k_feat, k_npts = jax.random.split(key, 3)
    params = init_params(k_param)

    # 2 agents (record_len = [2]) -> one fused sample; 16 occupied pillars per agent
    n_agents = 2
    m_vox = 16 * n_agents
    agent_ids = jnp.repeat(jnp.arange(n_agents, dtype=jnp.int32), 16)
    cell = ((jnp.arange(m_vox, dtype=jnp.int32) % 16) * 17 + 5) % (GRID_H * GRID_W)
    ys = cell // GRID_W
    xs = cell % GRID_W
    voxel_coords = jnp.stack(
        [agent_ids, jnp.zeros(m_vox, jnp.int32), ys, xs], axis=1)           # [M, 4]

    voxel_num_points = jax.random.randint(k_npts, (m_vox,), 1, MAX_PTS + 1).astype(jnp.int32)
    pts = jax.random.uniform(k_feat, (m_vox, MAX_PTS, 4), minval=-1.0, maxval=1.0)
    pts = pts * jnp.array([8.0, 8.0, 2.0, 0.5]) + jnp.array([0.0, 0.0, -1.0, 0.5])
    pad_mask = (jnp.arange(MAX_PTS)[None, :] < voxel_num_points[:, None]).astype(jnp.float32)
    voxel_features = (pts * pad_mask[..., None]).astype(jnp.float32)

    data_dict = {
        "processed_lidar": {
            "voxel_features": voxel_features,
            "voxel_coords": voxel_coords,
            "voxel_num_points": voxel_num_points,
        },
        "record_len": [2],
        "lidar_pose": jnp.zeros((n_agents, 6), jnp.float32),
        "pairwise_t_matrix": jnp.tile(jnp.eye(4, dtype=jnp.float32), (1, 2, 2, 1, 1)),
    }

    out = point_pillar_deform_transformer(params, data_dict)
    jax.block_until_ready(out["psm"])
    jax.block_until_ready(out["rm"])
    assert out["psm"].shape == (1, ANCHOR_NUM, H2, W2)
    assert out["rm"].shape == (1, 7 * ANCHOR_NUM, H2, W2)
    print("KERNEL_OK")
</pallas_src>

<mosaic_0001>
module attributes {stable_mosaic.version = 11 : i64} {
  func.func @_pfn_kernel(%arg0: memref<256x16xf32, #tpu.memory_space<vmem>>, %arg1: memref<256x1xf32, #tpu.memory_space<vmem>>, %arg2: memref<16x64xf32, #tpu.memory_space<vmem>>, %arg3: memref<1x64xf32, #tpu.memory_space<vmem>>, %arg4: memref<32x64xf32, #tpu.memory_space<vmem>>) attributes {dimension_semantics = [], scalar_prefetch = 0 : i64, scratch_operands = 0 : i64, tpu.core_type = #tpu.core_type<tc>} {
    %c0 = arith.constant 0 : index
    %c0_0 = arith.constant 0 : index
    %0 = vector.load %arg0[%c0, %c0_0] : memref<256x16xf32, #tpu.memory_space<vmem>>, vector<256x16xf32>
    %c0_1 = arith.constant 0 : index
    %c0_2 = arith.constant 0 : index
    %1 = vector.load %arg2[%c0_1, %c0_2] : memref<16x64xf32, #tpu.memory_space<vmem>>, vector<16x64xf32>
    %cst = arith.constant dense<0.000000e+00> : vector<256x64xf32>
    %2 = tpu.matmul %0, %1, %cst {dimension_numbers = #tpu.dot_dimension_numbers<[1], [0], [0], [1], [0, 0, 1, 1], [], []>} : vector<256x16xf32>, vector<16x64xf32>, vector<256x64xf32> -> vector<256x64xf32>
    %c0_3 = arith.constant 0 : index
    %c0_4 = arith.constant 0 : index
    %3 = vector.load %arg3[%c0_3, %c0_4] : memref<1x64xf32, #tpu.memory_space<vmem>>, vector<1x64xf32>
    %4 = vector.broadcast %3 : vector<1x64xf32> to vector<256x64xf32>
    %5 = arith.addf %2, %4 : vector<256x64xf32>
    %cst_5 = arith.constant 0.000000e+00 : f32
    %6 = vector.broadcast %cst_5 : f32 to vector<256x64xf32>
    %7 = arith.maximumf %5, %6 : vector<256x64xf32>
    %c0_6 = arith.constant 0 : index
    %c0_7 = arith.constant 0 : index
    %8 = vector.load %arg1[%c0_6, %c0_7] : memref<256x1xf32, #tpu.memory_space<vmem>>, vector<256x1xf32>
    %cst_8 = arith.constant 0.000000e+00 : f32
    %9 = vector.broadcast %cst_8 : f32 to vector<256x1xf32>
    %10 = arith.cmpf ogt, %8, %9 : vector<256x1xf32>
    %cst_9 = arith.constant -1.000000e+09 : f32
    %11 = vector.shape_cast %10 : vector<256x1xi1> to vector<256x1xi1>
    %12 = vector.broadcast %11 : vector<256x1xi1> to vector<256x64xi1>
    %13 = vector.broadcast %cst_9 : f32 to vector<256x64xf32>
    %14 = arith.select %12, %7, %13 : vector<256x64xi1>, vector<256x64xf32>
    %15 = vector.shape_cast %14 : vector<256x64xf32> to vector<32x8x64xf32>
    %cst_10 = arith.constant dense<0xFF800000> : vector<32x64xf32>
    %16 = vector.multi_reduction <maximumf>, %15, %cst_10 [1] : vector<32x8x64xf32> to vector<32x64xf32>
    %cst_11 = arith.constant 0.000000e+00 : f32
    %17 = vector.broadcast %cst_11 : f32 to vector<32x64xf32>
    %18 = arith.maximumf %16, %17 : vector<32x64xf32>
    %c0_12 = arith.constant 0 : index
    %c0_13 = arith.constant 0 : index
    %19 = vector.load %arg4[%c0_12, %c0_13] : memref<32x64xf32, #tpu.memory_space<vmem>>, vector<32x64xf32>
    tpu.vector_store %arg4[%c0_12, %c0_13], %18 {strides = array<i32>} : memref<32x64xf32, #tpu.memory_space<vmem>>, vector<32x64xf32>,
    return
  }
}

</mosaic_0001>

<llo_original>
// kernel: tpu_custom_call.1
$region0: #{tpu_custom_call.1}
  #allocation0 [shape = 'u32[]', space=smem, size = 0x4, offset = 0x4, fixed_abs, tag = 'smem constant byte address 0x4 - core index']
  #allocation1 [shape = 'u32[144,128]{1,0:T(1,128)}', space=vmem, size = 0x12000, scoped, tag = 'internal scratch']
  %s0 = inlined_call_operand.vmem [shape: f32[256,16], index: 0, kind: input, shape index: {}]
  %s1 = inlined_call_operand.vmem [shape: f32[256,1], index: 1, kind: input, shape index: {}]
  %s2 = inlined_call_operand.vmem [shape: f32[16,64], index: 2, kind: input, shape index: {}]
  %s3 = inlined_call_operand.vmem [shape: f32[1,64], index: 3, kind: input, shape index: {}]
  %s4 = inlined_call_operand.hbm [shape: f32[32,64], index: 4, kind: output, shape index: {}]
  %s5 = sld [smem:[#allocation0]]
  $region26: #{tpu_custom_call.1} parent=0
    _
  %s7 = ssub.s32 1, %s5
  %s8 = scalar_select 0, %s7, %s5
  $region1: #{tpu_custom_call.1} parent=0
    #allocation2 [shape = 'u8[16384]{0}', space=vmem, size = 0x4000, scoped, tag = 'output window, operand 0, single buffered']
    #allocation3 [shape = 's32[1]{0}', space=sflag, size = 0x4, scoped, tag = 'scoped memory for tpu_custom_call.1']
    %9 = vsyncpa [#allocation3], 0
    // Predicated region
    $region2: #{tpu_custom_call.1} parent=1 // pred_check
      _
    $region3: #{tpu_custom_call.1} parent=1 // pred_check_branch
      %11 = sbr.rel (0) target = $region5
    $region4: #{tpu_custom_call.1} parent=1 // pred_region
      _
    $region5: #{tpu_custom_call.1} parent=1 // pred_fallthru
      _
    // Predicated region
    $region6: #{tpu_custom_call.1} parent=1 // pred_check
      _
    $region7: #{tpu_custom_call.1} parent=1 // pred_check_branch
      %13 = sbr.rel (0) target = $region9
    $region8: #{tpu_custom_call.1} parent=1 // pred_region
      _
    $region9: #{tpu_custom_call.1} parent=1 // pred_fallthru
      _
    // Predicated region
    $region10: #{tpu_custom_call.1} parent=1 // pred_check
      _
    $region11: #{tpu_custom_call.1} parent=1 // pred_check_branch
      %15 = sbr.rel (0) target = $region13
    $region12: #{tpu_custom_call.1} parent=1 // pred_region
      _
    $region13: #{tpu_custom_call.1} parent=1 // pred_fallthru
      _
    // Predicated region
    $region14: #{tpu_custom_call.1} parent=1 // pred_check
      _
    $region15: #{tpu_custom_call.1} parent=1 // pred_check_branch
      %17 = sbr.rel (0) target = $region17
    $region16: #{tpu_custom_call.1} parent=1 // pred_region
      _
    $region17: #{tpu_custom_call.1} parent=1 // pred_fallthru
      _
    %v18 = vld [vmem:[%s0] sm:$0xff]
    %v19 = vld [vmem:[%s0 + $0x8] sm:$0xff]
    %v20 = vld [vmem:[%s0 + $0x10] sm:$0xff]
    %v21 = vld [vmem:[%s0 + $0x18] sm:$0xff]
    %v22 = vld [vmem:[%s0 + $0x20] sm:$0xff]
    %v23 = vld [vmem:[%s0 + $0x28] sm:$0xff]
    %v24 = vld [vmem:[%s0 + $0x30] sm:$0xff]
    %v25 = vld [vmem:[%s0 + $0x38] sm:$0xff]
    %v26 = vld [vmem:[%s0 + $0x40] sm:$0xff]
    %v27 = vld [vmem:[%s0 + $0x48] sm:$0xff]
    %v28 = vld [vmem:[%s0 + $0x50] sm:$0xff]
    %v29 = vld [vmem:[%s0 + $0x58] sm:$0xff]
    %v30 = vld [vmem:[%s0 + $0x60] sm:$0xff]
    %v31 = vld [vmem:[%s0 + $0x68] sm:$0xff]
    %v32 = vld [vmem:[%s0 + $0x70] sm:$0xff]
    %v33 = vld [vmem:[%s0 + $0x78] sm:$0xff]
    %v34 = vld [vmem:[%s0 + $0x80] sm:$0xff]
    %v35 = vld [vmem:[%s0 + $0x88] sm:$0xff]
    %v36 = vld [vmem:[%s0 + $0x90] sm:$0xff]
    %v37 = vld [vmem:[%s0 + $0x98] sm:$0xff]
    %v38 = vld [vmem:[%s0 + $0xa0] sm:$0xff]
    %v39 = vld [vmem:[%s0 + $0xa8] sm:$0xff]
    %v40 = vld [vmem:[%s0 + $0xb0] sm:$0xff]
    %v41 = vld [vmem:[%s0 + $0xb8] sm:$0xff]
    %v42 = vld [vmem:[%s0 + $0xc0] sm:$0xff]
    %v43 = vld [vmem:[%s0 + $0xc8] sm:$0xff]
    %v44 = vld [vmem:[%s0 + $0xd0] sm:$0xff]
    %v45 = vld [vmem:[%s0 + $0xd8] sm:$0xff]
    %v46 = vld [vmem:[%s0 + $0xe0] sm:$0xff]
    %v47 = vld [vmem:[%s0 + $0xe8] sm:$0xff]
    %v48 = vld [vmem:[%s0 + $0xf0] sm:$0xff]
    %v49 = vld [vmem:[%s0 + $0xf8] sm:$0xff]
    %v50 = vld [vmem:[%s2] sm:$0xff]
    %v51 = vld [vmem:[%s2 + $0x8] sm:$0xff]
    %v52 = vld [vmem:[%s3] sm:$0x1]
    %v54 = vlaneseq
    %v55 = vshrl.u32 %v54, 7
    %v56 = vsub.s32 0, %v55
    %v57 = vrot.slane %v52, %v56
    %vm59 = vcmask 130048
    %v61 = vsel %vm59, %v18, 0
    %v64 = vsel %vm59, %v19, 0
    %v67 = vsel %vm59, %v20, 0
    %v70 = vsel %vm59, %v21, 0
    %v73 = vsel %vm59, %v22, 0
    %v76 = vsel %vm59, %v23, 0
    %v79 = vsel %vm59, %v24, 0
    %v82 = vsel %vm59, %v25, 0
    %v85 = vsel %vm59, %v26, 0
    %v88 = vsel %vm59, %v27, 0
    %v91 = vsel %vm59, %v28, 0
    %v94 = vsel %vm59, %v29, 0
    %v97 = vsel %vm59, %v30, 0
    %v100 = vsel %vm59, %v31, 0
    %v103 = vsel %vm59, %v32, 0
    %v106 = vsel %vm59, %v33, 0
    %v109 = vsel %vm59, %v34, 0
    %v112 = vsel %vm59, %v35, 0
    %v115 = vsel %vm59, %v36, 0
    %v118 = vsel %vm59, %v37, 0
    %v121 = vsel %vm59, %v38, 0
    %v124 = vsel %vm59, %v39, 0
    %v127 = vsel %vm59, %v40, 0
    %v130 = vsel %vm59, %v41, 0
    %v133 = vsel %vm59, %v42, 0
    %v136 = vsel %vm59, %v43, 0
    %v139 = vsel %vm59, %v44, 0
    %v142 = vsel %vm59, %v45, 0
    %v145 = vsel %vm59, %v46, 0
    %v148 = vsel %vm59, %v47, 0
    %v151 = vsel %vm59, %v48, 0
    %v154 = vsel %vm59, %v49, 0
    %156 = vmatprep.subr.mxu0 0.0
    %157 = vmatpush1.msra.mxu0 %v50
    %158 = vmatprep.subr.mxu0 0.0
    %159 = vmatpush1.msra.mxu0 %v51
    %160 = vmatprep.subr.mxu0 0.0
    %161 = vmatpush1.msra.mxu0 0.0
    %162 = vmatprep.subr.mxu0 0.0
    %163 = vmatpush1.msra.mxu0 0.0
    %164 = vmatprep.subr.mxu0 0.0
    %165 = vmatpush1.msra.mxu0 0.0
    %166 = vmatprep.subr.mxu0 0.0
    %167 = vmatpush1.msra.mxu0 0.0
    %168 = vmatprep.subr.mxu0 0.0
    %169 = vmatpush1.msra.mxu0 0.0
    %170 = vmatprep.subr.mxu0 0.0
    %171 = vmatpush1.msra.mxu0 0.0
    %172 = vmatprep.subr.mxu0 0.0
    %173 = vmatpush1.msra.mxu0 0.0
    %174 = vmatprep.subr.mxu0 0.0
    %175 = vmatpush1.msra.mxu0 0.0
    %176 = vmatprep.subr.mxu0 0.0
    %177 = vmatpush1.msra.mxu0 0.0
    %178 = vmatprep.subr.mxu0 0.0
    %179 = vmatpush1.msra.mxu0 0.0
    %180 = vmatprep.subr.mxu0 0.0
    %181 = vmatpush1.msra.mxu0 0.0
    %182 = vmatprep.subr.mxu0 0.0
    %183 = vmatpush1.msra.mxu0 0.0
    %184 = vmatprep.subr.mxu0 0.0
    %185 = vmatpush1.msra.mxu0 0.0
    %186 = vmatprep.subr.mxu0 0.0
    %187 = vmatpush1.msra.mxu0 0.0
    %188 = vmatprep.subr.mxu0 0.0
    %189 = vmatpush1.msra.mxu0 0.0
    %190 = vmatprep.subr.mxu0 0.0
    %191 = vmatpush1.msra.mxu0 0.0
    %192 = vmatprep.subr.mxu0 0.0
    %193 = vmatpush1.msra.mxu0 0.0
    %194 = vmatprep.subr.mxu0 0.0
    %195 = vmatpush1.msra.mxu0 0.0
    %196 = vmatprep.subr.mxu0 0.0
    %197 = vmatpush1.msra.mxu0 0.0
    %198 = vmatprep.subr.mxu0 0.0
    %199 = vmatpush1.msra.mxu0 0.0
    %200 = vmatprep.subr.mxu0 0.0
    %201 = vmatpush1.msra.mxu0 0.0
    %202 = vmatprep.subr.mxu0 0.0
    %203 = vmatpush1.msra.mxu0 0.0
    %204 = vmatprep.subr.mxu0 0.0
    %205 = vmatpush1.msra.mxu0 0.0
    %206 = vmatprep.subr.mxu0 0.0
    %207 = vmatpush1.msra.mxu0 0.0
    %208 = vmatprep.subr.mxu0 0.0
    %209 = vmatpush1.msra.mxu0 0.0
    %210 = vmatprep.subr.mxu0 0.0
    %211 = vmatpush1.msra.mxu0 0.0
    %212 = vmatprep.subr.mxu0 0.0
    %213 = vmatpush1.msra.mxu0 0.0
    %214 = vmatprep.subr.mxu0 0.0
    %215 = vmatpush1.msra.mxu0 0.0
    %216 = vmatprep.subr.mxu0 0.0
    %217 = vmatpush1.msra.mxu0 0.0
    %218 = vmatprep.subr.mxu0 0.0
    %219 = vmatpush1.msra.mxu0 0.0
    %220 = vmatprep.mubr.f32.mxu0 0.0
    %221 = vmatmul.mubr.f32.gmra.mrb[0].mxu0 %v61
    %v222 = vpop.f32.mrb[0].mxu0
    %v223 = vadd.f32 %v57, %v222
    %v224 = vpop.f32.mrb[0].mxu0
    %225 = vmatprep.mubr.f32.mxu0 0.0
    %226 = vmatmul.mubr.f32.gmra.mrb[0].mxu0 %v64
    %v227 = vpop.f32.mrb[0].mxu0
    %v228 = vadd.f32 %v57, %v227
    %v229 = vpop.f32.mrb[0].mxu0
    %230 = vmatprep.mubr.f32.mxu0 0.0
    %231 = vmatmul.mubr.f32.gmra.mrb[0].mxu0 %v67
    %v232 = vpop.f32.mrb[0].mxu0
    %v233 = vadd.f32 %v57, %v232
    %v234 = vpop.f32.mrb[0].mxu0
    %235 = vmatprep.mubr.f32.mxu0 0.0
    %236 = vmatmul.mubr.f32.gmra.mrb[0].mxu0 %v70
    %v237 = vpop.f32.mrb[0].mxu0
    %v238 = vadd.f32 %v57, %v237
    %v239 = vpop.f32.mrb[0].mxu0
    %240 = vmatprep.mubr.f32.mxu0 0.0
    %241 = vmatmul.mubr.f32.gmra.mrb[0].mxu0 %v73
    %v242 = vpop.f32.mrb[0].mxu0
    %v243 = vadd.f32 %v57, %v242
    %v244 = vpop.f32.mrb[0].mxu0
    %245 = vmatprep.mubr.f32.mxu0 0.0
    %246 = vmatmul.mubr.f32.gmra.mrb[0].mxu0 %v76
    %v247 = vpop.f32.mrb[0].mxu0
    %v248 = vadd.f32 %v57, %v247
    %v249 = vpop.f32.mrb[0].mxu0
    %250 = vmatprep.mubr.f32.mxu0 0.0
    %251 = vmatmul.mubr.f32.gmra.mrb[0].mxu0 %v79
    %v252 = vpop.f32.mrb[0].mxu0
    %v253 = vadd.f32 %v57, %v252
    %v254 = vpop.f32.mrb[0].mxu0
    %255 = vmatprep.mubr.f32.mxu0 0.0
    %256 = vmatmul.mubr.f32.gmra.mrb[0].mxu0 %v82
    %v257 = vpop.f32.mrb[0].mxu0
    %v258 = vadd.f32 %v57, %v257
    %v259 = vpop.f32.mrb[0].mxu0
    %260 = vmatprep.mubr.f32.mxu0 0.0
    %261 = vmatmul.mubr.f32.gmra.mrb[0].mxu0 %v85
    %v262 = vpop.f32.mrb[0].mxu0
    %v263 = vadd.f32 %v57, %v262
    %v264 = vpop.f32.mrb[0].mxu0
    %265 = vmatprep.mubr.f32.mxu0 0.0
    %266 = vmatmul.mubr.f32.gmra.mrb[0].mxu0 %v88
    %v267 = vpop.f32.mrb[0].mxu0
    %v268 = vadd.f32 %v57, %v267
    %v269 = vpop.f32.mrb[0].mxu0
    %270 = vmatprep.mubr.f32.mxu0 0.0
    %271 = vmatmul.mubr.f32.gmra.mrb[0].mxu0 %v91
    %v272 = vpop.f32.mrb[0].mxu0
    %v273 = vadd.f32 %v57, %v272
    %v274 = vpop.f32.mrb[0].mxu0
    %275 = vmatprep.mubr.f32.mxu0 0.0
    %276 = vmatmul.mubr.f32.gmra.mrb[0].mxu0 %v94
    %v277 = vpop.f32.mrb[0].mxu0
    %v278 = vadd.f32 %v57, %v277
    %v279 = vpop.f32.mrb[0].mxu0
    %280 = vmatprep.mubr.f32.mxu0 0.0
    %281 = vmatmul.mubr.f32.gmra.mrb[0].mxu0 %v97
    %v282 = vpop.f32.mrb[0].mxu0
    %v283 = vadd.f32 %v57, %v282
    %v284 = vpop.f32.mrb[0].mxu0
    %285 = vmatprep.mubr.f32.mxu0 0.0
    %286 = vmatmul.mubr.f32.gmra.mrb[0].mxu0 %v100
    %v287 = vpop.f32.mrb[0].mxu0
    %v288 = vadd.f32 %v57, %v287
    %v289 = vpop.f32.mrb[0].mxu0
    %290 = vmatprep.mubr.f32.mxu0 0.0
    %291 = vmatmul.mubr.f32.gmra.mrb[0].mxu0 %v103
    %v292 = vpop.f32.mrb[0].mxu0
    %v293 = vadd.f32 %v57, %v292
    %v294 = vpop.f32.mrb[0].mxu0
    %295 = vmatprep.mubr.f32.mxu0 0.0
    %296 = vmatmul.mubr.f32.gmra.mrb[0].mxu0 %v106
    %v297 = vpop.f32.mrb[0].mxu0
    %v298 = vadd.f32 %v57, %v297
    %v299 = vpop.f32.mrb[0].mxu0
    %300 = vmatprep.mubr.f32.mxu0 0.0
    %301 = vmatmul.mubr.f32.gmra.mrb[0].mxu0 %v109
    %v302 = vpop.f32.mrb[0].mxu0
    %v303 = vadd.f32 %v57, %v302
    %v304 = vpop.f32.mrb[0].mxu0
    %305 = vmatprep.mubr.f32.mxu0 0.0
    %306 = vmatmul.mubr.f32.gmra.mrb[0].mxu0 %v112
    %v307 = vpop.f32.mrb[0].mxu0
    %v308 = vadd.f32 %v57, %v307
    %v309 = vpop.f32.mrb[0].mxu0
    %310 = vmatprep.mubr.f32.mxu0 0.0
    %311 = vmatmul.mubr.f32.gmra.mrb[0].mxu0 %v115
    %v312 = vpop.f32.mrb[0].mxu0
    %v313 = vadd.f32 %v57, %v312
    %v314 = vpop.f32.mrb[0].mxu0
    %315 = vmatprep.mubr.f32.mxu0 0.0
    %316 = vmatmul.mubr.f32.gmra.mrb[0].mxu0 %v118
    %v317 = vpop.f32.mrb[0].mxu0
    %v318 = vadd.f32 %v57, %v317
    %v319 = vpop.f32.mrb[0].mxu0
    %320 = vmatprep.mubr.f32.mxu0 0.0
    %321 = vmatmul.mubr.f32.gmra.mrb[0].mxu0 %v121
    %v322 = vpop.f32.mrb[0].mxu0
    %v323 = vadd.f32 %v57, %v322
    %v324 = vpop.f32.mrb[0].mxu0
    %325 = vmatprep.mubr.f32.mxu0 0.0
    %326 = vmatmul.mubr.f32.gmra.mrb[0].mxu0 %v124
    %v327 = vpop.f32.mrb[0].mxu0
    %v328 = vadd.f32 %v57, %v327
    %v329 = vpop.f32.mrb[0].mxu0
    %330 = vmatprep.mubr.f32.mxu0 0.0
    %331 = vmatmul.mubr.f32.gmra.mrb[0].mxu0 %v127
    %v332 = vpop.f32.mrb[0].mxu0
    %v333 = vadd.f32 %v57, %v332
    %v334 = vpop.f32.mrb[0].mxu0
    %335 = vmatprep.mubr.f32.mxu0 0.0
    %336 = vmatmul.mubr.f32.gmra.mrb[0].mxu0 %v130
    %v337 = vpop.f32.mrb[0].mxu0
    %v338 = vadd.f32 %v57, %v337
    %v339 = vpop.f32.mrb[0].mxu0
    %340 = vmatprep.mubr.f32.mxu0 0.0
    %341 = vmatmul.mubr.f32.gmra.mrb[0].mxu0 %v133
    %v342 = vpop.f32.mrb[0].mxu0
    %v343 = vadd.f32 %v57, %v342
    %v344 = vpop.f32.mrb[0].mxu0
    %345 = vmatprep.mubr.f32.mxu0 0.0
    %346 = vmatmul.mubr.f32.gmra.mrb[0].mxu0 %v136
    %v347 = vpop.f32.mrb[0].mxu0
    %v348 = vadd.f32 %v57, %v347
    %v349 = vpop.f32.mrb[0].mxu0
    %350 = vmatprep.mubr.f32.mxu0 0.0
    %351 = vmatmul.mubr.f32.gmra.mrb[0].mxu0 %v139
    %v352 = vpop.f32.mrb[0].mxu0
    %v353 = vadd.f32 %v57, %v352
    %v354 = vpop.f32.mrb[0].mxu0
    %355 = vmatprep.mubr.f32.mxu0 0.0
    %356 = vmatmul.mubr.f32.gmra.mrb[0].mxu0 %v142
    %v357 = vpop.f32.mrb[0].mxu0
    %v358 = vadd.f32 %v57, %v357
    %v359 = vpop.f32.mrb[0].mxu0
    %360 = vmatprep.mubr.f32.mxu0 0.0
    %361 = vmatmul.mubr.f32.gmra.mrb[0].mxu0 %v145
    %v362 = vpop.f32.mrb[0].mxu0
    %v363 = vadd.f32 %v57, %v362
    %v364 = vpop.f32.mrb[0].mxu0
    %365 = vmatprep.mubr.f32.mxu0 0.0
    %366 = vmatmul.mubr.f32.gmra.mrb[0].mxu0 %v148
    %v367 = vpop.f32.mrb[0].mxu0
    %v368 = vadd.f32 %v57, %v367
    %v369 = vpop.f32.mrb[0].mxu0
    %370 = vmatprep.mubr.f32.mxu0 0.0
    %371 = vmatmul.mubr.f32.gmra.mrb[0].mxu0 %v151
    %v372 = vpop.f32.mrb[0].mxu0
    %v373 = vadd.f32 %v57, %v372
    %v374 = vpop.f32.mrb[0].mxu0
    %375 = vmatprep.mubr.f32.mxu0 0.0
    %376 = vmatmul.mubr.f32.gmra.mrb[0].mxu0 %v154
    %v377 = vpop.f32.mrb[0].mxu0
    %v378 = vadd.f32 %v57, %v377
    %v379 = vpop.f32.mrb[0].mxu0
    %380 = vdwg.mxu0
    %v381 = vmax.f32 %v223, 0.0
    %v382 = vmax.f32 %v228, 0.0
    %v383 = vmax.f32 %v233, 0.0
    %v384 = vmax.f32 %v238, 0.0
    %v385 = vmax.f32 %v243, 0.0
    %v386 = vmax.f32 %v248, 0.0
    %v387 = vmax.f32 %v253, 0.0
    %v388 = vmax.f32 %v258, 0.0
    %v389 = vmax.f32 %v263, 0.0
    %v390 = vmax.f32 %v268, 0.0
    %v391 = vmax.f32 %v273, 0.0
    %v392 = vmax.f32 %v278, 0.0
    %v393 = vmax.f32 %v283, 0.0
    %v394 = vmax.f32 %v288, 0.0
    %v395 = vmax.f32 %v293, 0.0
    %v396 = vmax.f32 %v298, 0.0
    %v397 = vmax.f32 %v303, 0.0
    %v398 = vmax.f32 %v308, 0.0
    %v399 = vmax.f32 %v313, 0.0
    %v400 = vmax.f32 %v318, 0.0
    %v401 = vmax.f32 %v323, 0.0
    %v402 = vmax.f32 %v328, 0.0
    %v403 = vmax.f32 %v333, 0.0
    %v404 = vmax.f32 %v338, 0.0
    %v405 = vmax.f32 %v343, 0.0
    %v406 = vmax.f32 %v348, 0.0
    %v407 = vmax.f32 %v353, 0.0
    %v408 = vmax.f32 %v358, 0.0
    %v409 = vmax.f32 %v363, 0.0
    %v410 = vmax.f32 %v368, 0.0
    %v411 = vmax.f32 %v373, 0.0
    %v412 = vmax.f32 %v378, 0.0
    %v413 = vld [vmem:[%s1] sm:$0xff]
    %v414 = vld [vmem:[%s1 + $0x8] sm:$0xff]
    %v415 = vld [vmem:[%s1 + $0x10] sm:$0xff]
    %v416 = vld [vmem:[%s1 + $0x18] sm:$0xff]
    %v417 = vld [vmem:[%s1 + $0x20] sm:$0xff]
    %v418 = vld [vmem:[%s1 + $0x28] sm:$0xff]
    %v419 = vld [vmem:[%s1 + $0x30] sm:$0xff]
    %v420 = vld [vmem:[%s1 + $0x38] sm:$0xff]
    %v421 = vld [vmem:[%s1 + $0x40] sm:$0xff]
    %v422 = vld [vmem:[%s1 + $0x48] sm:$0xff]
    %v423 = vld [vmem:[%s1 + $0x50] sm:$0xff]
    %v424 = vld [vmem:[%s1 + $0x58] sm:$0xff]
    %v425 = vld [vmem:[%s1 + $0x60] sm:$0xff]
    %v426 = vld [vmem:[%s1 + $0x68] sm:$0xff]
    %v427 = vld [vmem:[%s1 + $0x70] sm:$0xff]
    %v428 = vld [vmem:[%s1 + $0x78] sm:$0xff]
    %v429 = vld [vmem:[%s1 + $0x80] sm:$0xff]
    %v430 = vld [vmem:[%s1 + $0x88] sm:$0xff]
    %v431 = vld [vmem:[%s1 + $0x90] sm:$0xff]
    %v432 = vld [vmem:[%s1 + $0x98] sm:$0xff]
    %v433 = vld [vmem:[%s1 + $0xa0] sm:$0xff]
    %v434 = vld [vmem:[%s1 + $0xa8] sm:$0xff]
    %v435 = vld [vmem:[%s1 + $0xb0] sm:$0xff]
    %v436 = vld [vmem:[%s1 + $0xb8] sm:$0xff]
    %v437 = vld [vmem:[%s1 + $0xc0] sm:$0xff]
    %v438 = vld [vmem:[%s1 + $0xc8] sm:$0xff]
    %v439 = vld [vmem:[%s1 + $0xd0] sm:$0xff]
    %v440 = vld [vmem:[%s1 + $0xd8] sm:$0xff]
    %v441 = vld [vmem:[%s1 + $0xe0] sm:$0xff]
    %v442 = vld [vmem:[%s1 + $0xe8] sm:$0xff]
    %v443 = vld [vmem:[%s1 + $0xf0] sm:$0xff]
    %v444 = vld [vmem:[%s1 + $0xf8] sm:$0xff]
    %vm445 = vcmp.gt.f32.partialorder %v413, 0.0
    %vm446 = vcmp.gt.f32.partialorder %v414, 0.0
    %vm447 = vcmp.gt.f32.partialorder %v415, 0.0
    %vm448 = vcmp.gt.f32.partialorder %v416, 0.0
    %vm449 = vcmp.gt.f32.partialorder %v417, 0.0
    %vm450 = vcmp.gt.f32.partialorder %v418, 0.0
    %vm451 = vcmp.gt.f32.partialorder %v419, 0.0
    %vm452 = vcmp.gt.f32.partialorder %v420, 0.0
    %vm453 = vcmp.gt.f32.partialorder %v421, 0.0
    %vm454 = vcmp.gt.f32.partialorder %v422, 0.0
    %vm455 = vcmp.gt.f32.partialorder %v423, 0.0
    %vm456 = vcmp.gt.f32.partialorder %v424, 0.0
    %vm457 = vcmp.gt.f32.partialorder %v425, 0.0
    %vm458 = vcmp.gt.f32.partialorder %v426, 0.0
    %vm459 = vcmp.gt.f32.partialorder %v427, 0.0
    %vm460 = vcmp.gt.f32.partialorder %v428, 0.0
    %vm461 = vcmp.gt.f32.partialorder %v429, 0.0
    %vm462 = vcmp.gt.f32.partialorder %v430, 0.0
    %vm463 = vcmp.gt.f32.partialorder %v431, 0.0
    %vm464 = vcmp.gt.f32.partialorder %v432, 0.0
    %vm465 = vcmp.gt.f32.partialorder %v433, 0.0
    %vm466 = vcmp.gt.f32.partialorder %v434, 0.0
    %vm467 = vcmp.gt.f32.partialorder %v435, 0.0
    %vm468 = vcmp.gt.f32.partialorder %v436, 0.0
    %vm469 = vcmp.gt.f32.partialorder %v437, 0.0
    %vm470 = vcmp.gt.f32.partialorder %v438, 0.0
    %vm471 = vcmp.gt.f32.partialorder %v439, 0.0
    %vm472 = vcmp.gt.f32.partialorder %v440, 0.0
    %vm473 = vcmp.gt.f32.partialorder %v441, 0.0
    %vm474 = vcmp.gt.f32.partialorder %v442, 0.0
    %vm475 = vcmp.gt.f32.partialorder %v443, 0.0
    %vm476 = vcmp.gt.f32.partialorder %v444, 0.0
    %v477 = vsel %vm445, 1, 0
    %v478 = vsel %vm446, 1, 0
    %v479 = vsel %vm447, 1, 0
    %v480 = vsel %vm448, 1, 0
    %v481 = vsel %vm449, 1, 0
    %v482 = vsel %vm450, 1, 0
    %v483 = vsel %vm451, 1, 0
    %v484 = vsel %vm452, 1, 0
    %v485 = vsel %vm453, 1, 0
    %v486 = vsel %vm454, 1, 0
    %v487 = vsel %vm455, 1, 0
    %v488 = vsel %vm456, 1, 0
    %v489 = vsel %vm457, 1, 0
    %v490 = vsel %vm458, 1, 0
    %v491 = vsel %vm459, 1, 0
    %v492 = vsel %vm460, 1, 0
    %v493 = vsel %vm461, 1, 0
    %v494 = vsel %vm462, 1, 0
    %v495 = vsel %vm463, 1, 0
    %v496 = vsel %vm464, 1, 0
    %v497 = vsel %vm465, 1, 0
    %v498 = vsel %vm466, 1, 0
    %v499 = vsel %vm467, 1, 0
    %v500 = vsel %vm468, 1, 0
    %v501 = vsel %vm469, 1, 0
    %v502 = vsel %vm470, 1, 0
    %v503 = vsel %vm471, 1, 0
    %v504 = vsel %vm472, 1, 0
    %v505 = vsel %vm473, 1, 0
    %v506 = vsel %vm474, 1, 0
    %v507 = vsel %vm475, 1, 0
    %v508 = vsel %vm476, 1, 0
    %509 = vset.pattern.permute.xlu0 0
    %510 = vperm.xlu0 %509, %v477
    %v511 = vpop.permute.xlu0 %510
    %512 = vset.pattern.permute.xlu0 0
    %513 = vperm.xlu0 %512, %v478
    %v514 = vpop.permute.xlu0 %513
    %515 = vset.pattern.permute.xlu0 0
    %516 = vperm.xlu0 %515, %v479
    %v517 = vpop.permute.xlu0 %516
    %518 = vset.pattern.permute.xlu0 0
    %519 = vperm.xlu0 %518, %v480
    %v520 = vpop.permute.xlu0 %519
    %521 = vset.pattern.permute.xlu0 0
    %522 = vperm.xlu0 %521, %v481
    %v523 = vpop.permute.xlu0 %522
    %524 = vset.pattern.permute.xlu0 0
    %525 = vperm.xlu0 %524, %v482
    %v526 = vpop.permute.xlu0 %525
    %527 = vset.pattern.permute.xlu0 0
    %528 = vperm.xlu0 %527, %v483
    %v529 = vpop.permute.xlu0 %528
    %530 = vset.pattern.permute.xlu0 0
    %531 = vperm.xlu0 %530, %v484
    %v532 = vpop.permute.xlu0 %531
    %533 = vset.pattern.permute.xlu0 0
    %534 = vperm.xlu0 %533, %v485
    %v535 = vpop.permute.xlu0 %534
    %536 = vset.pattern.permute.xlu0 0
    %537 = vperm.xlu0 %536, %v486
    %v538 = vpop.permute.xlu0 %537
    %539 = vset.pattern.permute.xlu0 0
    %540 = vperm.xlu0 %539, %v487
    %v541 = vpop.permute.xlu0 %540
    %542 = vset.pattern.permute.xlu0 0
    %543 = vperm.xlu0 %542, %v488
    %v544 = vpop.permute.xlu0 %543
    %545 = vset.pattern.permute.xlu0 0
    %546 = vperm.xlu0 %545, %v489
    %v547 = vpop.permute.xlu0 %546
    %548 = vset.pattern.permute.xlu0 0
    %549 = vperm.xlu0 %548, %v490
    %v550 = vpop.permute.xlu0 %549
    %551 = vset.pattern.permute.xlu0 0
    %552 = vperm.xlu0 %551, %v491
    %v553 = vpop.permute.xlu0 %552
    %554 = vset.pattern.permute.xlu0 0
    %555 = vperm.xlu0 %554, %v492
    %v556 = vpop.permute.xlu0 %555
    %557 = vset.pattern.permute.xlu0 0
    %558 = vperm.xlu0 %557, %v493
    %v559 = vpop.permute.xlu0 %558
    %560 = vset.pattern.permute.xlu0 0
    %561 = vperm.xlu0 %560, %v494
    %v562 = vpop.permute.xlu0 %561
    %563 = vset.pattern.permute.xlu0 0
    %564 = vperm.xlu0 %563, %v495
    %v565 = vpop.permute.xlu0 %564
    %566 = vset.pattern.permute.xlu0 0
    %567 = vperm.xlu0 %566, %v496
    %v568 = vpop.permute.xlu0 %567
    %569 = vset.pattern.permute.xlu0 0
    %570 = vperm.xlu0 %569, %v497
    %v571 = vpop.permute.xlu0 %570
    %572 = vset.pattern.permute.xlu0 0
    %573 = vperm.xlu0 %572, %v498
    %v574 = vpop.permute.xlu0 %573
    %575 = vset.pattern.permute.xlu0 0
    %576 = vperm.xlu0 %575, %v499
    %v577 = vpop.permute.xlu0 %576
    %578 = vset.pattern.permute.xlu0 0
    %579 = vperm.xlu0 %578, %v500
    %v580 = vpop.permute.xlu0 %579
    %581 = vset.pattern.permute.xlu0 0
    %582 = vperm.xlu0 %581, %v501
    %v583 = vpop.permute.xlu0 %582
    %584 = vset.pattern.permute.xlu0 0
    %585 = vperm.xlu0 %584, %v502
    %v586 = vpop.permute.xlu0 %585
    %587 = vset.pattern.permute.xlu0 0
    %588 = vperm.xlu0 %587, %v503
    %v589 = vpop.permute.xlu0 %588
    %590 = vset.pattern.permute.xlu0 0
    %591 = vperm.xlu0 %590, %v504
    %v592 = vpop.permute.xlu0 %591
    %593 = vset.pattern.permute.xlu0 0
    %594 = vperm.xlu0 %593, %v505
    %v595 = vpop.permute.xlu0 %594
    %596 = vset.pattern.permute.xlu0 0
    %597 = vperm.xlu0 %596, %v506
    %v598 = vpop.permute.xlu0 %597
    %599 = vset.pattern.permute.xlu0 0
    %600 = vperm.xlu0 %599, %v507
    %v601 = vpop.permute.xlu0 %600
    %602 = vset.pattern.permute.xlu0 0
    %603 = vperm.xlu0 %602, %v508
    %v604 = vpop.permute.xlu0 %603
    %vm605 = vcmp.eq.s32.totalorder %v511, 1
    %vm606 = vcmp.eq.s32.totalorder %v514, 1
    %vm607 = vcmp.eq.s32.totalorder %v517, 1
    %vm608 = vcmp.eq.s32.totalorder %v520, 1
    %vm609 = vcmp.eq.s32.totalorder %v523, 1
    %vm610 = vcmp.eq.s32.totalorder %v526, 1
    %vm611 = vcmp.eq.s32.totalorder %v529, 1
    %vm612 = vcmp.eq.s32.totalorder %v532, 1
    %vm613 = vcmp.eq.s32.totalorder %v535, 1
    %vm614 = vcmp.eq.s32.totalorder %v538, 1
    %vm615 = vcmp.eq.s32.totalorder %v541, 1
    %vm616 = vcmp.eq.s32.totalorder %v544, 1
    %vm617 = vcmp.eq.s32.totalorder %v547, 1
    %vm618 = vcmp.eq.s32.totalorder %v550, 1
    %vm619 = vcmp.eq.s32.totalorder %v553, 1
    %vm620 = vcmp.eq.s32.totalorder %v556, 1
    %vm621 = vcmp.eq.s32.totalorder %v559, 1
    %vm622 = vcmp.eq.s32.totalorder %v562, 1
    %vm623 = vcmp.eq.s32.totalorder %v565, 1
    %vm624 = vcmp.eq.s32.totalorder %v568, 1
    %vm625 = vcmp.eq.s32.totalorder %v571, 1
    %vm626 = vcmp.eq.s32.totalorder %v574, 1
    %vm627 = vcmp.eq.s32.totalorder %v577, 1
    %vm628 = vcmp.eq.s32.totalorder %v580, 1
    %vm629 = vcmp.eq.s32.totalorder %v583, 1
    %vm630 = vcmp.eq.s32.totalorder %v586, 1
    %vm631 = vcmp.eq.s32.totalorder %v589, 1
    %vm632 = vcmp.eq.s32.totalorder %v592, 1
    %vm633 = vcmp.eq.s32.totalorder %v595, 1
    %vm634 = vcmp.eq.s32.totalorder %v598, 1
    %vm635 = vcmp.eq.s32.totalorder %v601, 1
    %vm636 = vcmp.eq.s32.totalorder %v604, 1
    %v637 = vsel %vm605, %v381, -1e+09
    %v638 = vsel %vm606, %v382, -1e+09
    %v639 = vsel %vm607, %v383, -1e+09
    %v640 = vsel %vm608, %v384, -1e+09
    %v641 = vsel %vm609, %v385, -1e+09
    %v642 = vsel %vm610, %v386, -1e+09
    %v643 = vsel %vm611, %v387, -1e+09
    %v644 = vsel %vm612, %v388, -1e+09
    %v645 = vsel %vm613, %v389, -1e+09
    %v646 = vsel %vm614, %v390, -1e+09
    %v647 = vsel %vm615, %v391, -1e+09
    %v648 = vsel %vm616, %v392, -1e+09
    %v649 = vsel %vm617, %v393, -1e+09
    %v650 = vsel %vm618, %v394, -1e+09
    %v651 = vsel %vm619, %v395, -1e+09
    %v652 = vsel %vm620, %v396, -1e+09
    %v653 = vsel %vm621, %v397, -1e+09
    %v654 = vsel %vm622, %v398, -1e+09
    %v655 = vsel %vm623, %v399, -1e+09
    %v656 = vsel %vm624, %v400, -1e+09
    %v657 = vsel %vm625, %v401, -1e+09
    %v658 = vsel %vm626, %v402, -1e+09
    %v659 = vsel %vm627, %v403, -1e+09
    %v660 = vsel %vm628, %v404, -1e+09
    %v661 = vsel %vm629, %v405, -1e+09
    %v662 = vsel %vm630, %v406, -1e+09
    %v663 = vsel %vm631, %v407, -1e+09
    %v664 = vsel %vm632, %v408, -1e+09
    %v665 = vsel %vm633, %v409, -1e+09
    %v666 = vsel %vm634, %v410, -1e+09
    %v667 = vsel %vm635, %v411, -1e+09
    %v668 = vsel %vm636, %v412, -1e+09
    %vm669 = vcmask 523264
    %v670 = vsel %vm669, %v637, -inf
    %v671 = vrot.slane %v670, 4
    %v672 = vmax.f32 %v670, %v671
    %v673 = vrot.slane %v672, 2
    %v674 = vmax.f32 %v672, %v673
    %v675 = vrot.slane %v674, 1
    %v676 = vmax.f32 %v674, %v675
    %v677 = vsel %vm669, %v638, -inf
    %v678 = vrot.slane %v677, 4
    %v679 = vmax.f32 %v677, %v678
    %v680 = vrot.slane %v679, 2
    %v681 = vmax.f32 %v679, %v680
    %v682 = vrot.slane %v681, 1
    %v683 = vmax.f32 %v681, %v682
    %v684 = vsel %vm669, %v639, -inf
    %v685 = vrot.slane %v684, 4
    %v686 = vmax.f32 %v684, %v685
    %v687 = vrot.slane %v686, 2
    %v688 = vmax.f32 %v686, %v687
    %v689 = vrot.slane %v688, 1
    %v690 = vmax.f32 %v688, %v689
    %v691 = vsel %vm669, %v640, -inf
    %v692 = vrot.slane %v691, 4
    %v693 = vmax.f32 %v691, %v692
    %v694 = vrot.slane %v693, 2
    %v695 = vmax.f32 %v693, %v694
    %v696 = vrot.slane %v695, 1
    %v697 = vmax.f32 %v695, %v696
    %v698 = vsel %vm669, %v641, -inf
    %v699 = vrot.slane %v698, 4
    %v700 = vmax.f32 %v698, %v699
    %v701 = vrot.slane %v700, 2
    %v702 = vmax.f32 %v700, %v701
    %v703 = vrot.slane %v702, 1
    %v704 = vmax.f32 %v702, %v703
    %v705 = vsel %vm669, %v642, -inf
    %v706 = vrot.slane %v705, 4
    %v707 = vmax.f32 %v705, %v706
    %v708 = vrot.slane %v707, 2
    %v709 = vmax.f32 %v707, %v708
    %v710 = vrot.slane %v709, 1
    %v711 = vmax.f32 %v709, %v710
    %v712 = vsel %vm669, %v643, -inf
    %v713 = vrot.slane %v712, 4
    %v714 = vmax.f32 %v712, %v713
    %v715 = vrot.slane %v714, 2
    %v716 = vmax.f32 %v714, %v715
    %v717 = vrot.slane %v716, 1
    %v718 = vmax.f32 %v716, %v717
    %v719 = vsel %vm669, %v644, -inf
    %v720 = vrot.slane %v719, 4
    %v721 = vmax.f32 %v719, %v720
    %v722 = vrot.slane %v721, 2
    %v723 = vmax.f32 %v721, %v722
    %v724 = vrot.slane %v723, 1
    %v725 = vmax.f32 %v723, %v724
    %v726 = vsel %vm669, %v645, -inf
    %v727 = vrot.slane %v726, 4
    %v728 = vmax.f32 %v726, %v727
    %v729 = vrot.slane %v728, 2
    %v730 = vmax.f32 %v728, %v729
    %v731 = vrot.slane %v730, 1
    %v732 = vmax.f32 %v730, %v731
    %v733 = vsel %vm669, %v646, -inf
    %v734 = vrot.slane %v733, 4
    %v735 = vmax.f32 %v733, %v734
    %v736 = vrot.slane %v735, 2
    %v737 = vmax.f32 %v735, %v736
    %v738 = vrot.slane %v737, 1
    %v739 = vmax.f32 %v737, %v738
    %v740 = vsel %vm669, %v647, -inf
    %v741 = vrot.slane %v740, 4
    %v742 = vmax.f32 %v740, %v741
    %v743 = vrot.slane %v742, 2
    %v744 = vmax.f32 %v742, %v743
    %v745 = vrot.slane %v744, 1
    %v746 = vmax.f32 %v744, %v745
    %v747 = vsel %vm669, %v648, -inf
    %v748 = vrot.slane %v747, 4
    %v749 = vmax.f32 %v747, %v748
    %v750 = vrot.slane %v749, 2
    %v751 = vmax.f32 %v749, %v750
    %v752 = vrot.slane %v751, 1
    %v753 = vmax.f32 %v751, %v752
    %v754 = vsel %vm669, %v649, -inf
    %v755 = vrot.slane %v754, 4
    %v756 = vmax.f32 %v754, %v755
    %v757 = vrot.slane %v756, 2
    %v758 = vmax.f32 %v756, %v757
    %v759 = vrot.slane %v758, 1
    %v760 = vmax.f32 %v758, %v759
    %v761 = vsel %vm669, %v650, -inf
    %v762 = vrot.slane %v761, 4
    %v763 = vmax.f32 %v761, %v762
    %v764 = vrot.slane %v763, 2
    %v765 = vmax.f32 %v763, %v764
    %v766 = vrot.slane %v765, 1
    %v767 = vmax.f32 %v765, %v766
    %v768 = vsel %vm669, %v651, -inf
    %v769 = vrot.slane %v768, 4
    %v770 = vmax.f32 %v768, %v769
    %v771 = vrot.slane %v770, 2
    %v772 = vmax.f32 %v770, %v771
    %v773 = vrot.slane %v772, 1
    %v774 = vmax.f32 %v772, %v773
    %v775 = vsel %vm669, %v652, -inf
    %v776 = vrot.slane %v775, 4
    %v777 = vmax.f32 %v775, %v776
    %v778 = vrot.slane %v777, 2
    %v779 = vmax.f32 %v777, %v778
    %v780 = vrot.slane %v779, 1
    %v781 = vmax.f32 %v779, %v780
    %v782 = vsel %vm669, %v653, -inf
    %v783 = vrot.slane %v782, 4
    %v784 = vmax.f32 %v782, %v783
    %v785 = vrot.slane %v784, 2
    %v786 = vmax.f32 %v784, %v785
    %v787 = vrot.slane %v786, 1
    %v788 = vmax.f32 %v786, %v787
    %v789 = vsel %vm669, %v654, -inf
    %v790 = vrot.slane %v789, 4
    %v791 = vmax.f32 %v789, %v790
    %v792 = vrot.slane %v791, 2
    %v793 = vmax.f32 %v791, %v792
    %v794 = vrot.slane %v793, 1
    %v795 = vmax.f32 %v793, %v794
    %v796 = vsel %vm669, %v655, -inf
    %v797 = vrot.slane %v796, 4
    %v798 = vmax.f32 %v796, %v797
    %v799 = vrot.slane %v798, 2
    %v800 = vmax.f32 %v798, %v799
    %v801 = vrot.slane %v800, 1
    %v802 = vmax.f32 %v800, %v801
    %v803 = vsel %vm669, %v656, -inf
    %v804 = vrot.slane %v803, 4
    %v805 = vmax.f32 %v803, %v804
    %v806 = vrot.slane %v805, 2
    %v807 = vmax.f32 %v805, %v806
    %v808 = vrot.slane %v807, 1
    %v809 = vmax.f32 %v807, %v808
    %v810 = vsel %vm669, %v657, -inf
    %v811 = vrot.slane %v810, 4
    %v812 = vmax.f32 %v810, %v811
    %v813 = vrot.slane %v812, 2
    %v814 = vmax.f32 %v812, %v813
    %v815 = vrot.slane %v814, 1
    %v816 = vmax.f32 %v814, %v815
    %v817 = vsel %vm669, %v658, -inf
    %v818 = vrot.slane %v817, 4
    %v819 = vmax.f32 %v817, %v818
    %v820 = vrot.slane %v819, 2
    %v821 = vmax.f32 %v819, %v820
    %v822 = vrot.slane %v821, 1
    %v823 = vmax.f32 %v821, %v822
    %v824 = vsel %vm669, %v659, -inf
    %v825 = vrot.slane %v824, 4
    %v826 = vmax.f32 %v824, %v825
    %v827 = vrot.slane %v826, 2
    %v828 = vmax.f32 %v826, %v827
    %v829 = vrot.slane %v828, 1
    %v830 = vmax.f32 %v828, %v829
    %v831 = vsel %vm669, %v660, -inf
    %v832 = vrot.slane %v831, 4
    %v833 = vmax.f32 %v831, %v832
    %v834 = vrot.slane %v833, 2
    %v835 = vmax.f32 %v833, %v834
    %v836 = vrot.slane %v835, 1
    %v837 = vmax.f32 %v835, %v836
    %v838 = vsel %vm669, %v661, -inf
    %v839 = vrot.slane %v838, 4
    %v840 = vmax.f32 %v838, %v839
    %v841 = vrot.slane %v840, 2
    %v842 = vmax.f32 %v840, %v841
    %v843 = vrot.slane %v842, 1
    %v844 = vmax.f32 %v842, %v843
    %v845 = vsel %vm669, %v662, -inf
    %v846 = vrot.slane %v845, 4
    %v847 = vmax.f32 %v845, %v846
    %v848 = vrot.slane %v847, 2
    %v849 = vmax.f32 %v847, %v848
    %v850 = vrot.slane %v849, 1
    %v851 = vmax.f32 %v849, %v850
    %v852 = vsel %vm669, %v663, -inf
    %v853 = vrot.slane %v852, 4
    %v854 = vmax.f32 %v852, %v853
    %v855 = vrot.slane %v854, 2
    %v856 = vmax.f32 %v854, %v855
    %v857 = vrot.slane %v856, 1
    %v858 = vmax.f32 %v856, %v857
    %v859 = vsel %vm669, %v664, -inf
    %v860 = vrot.slane %v859, 4
    %v861 = vmax.f32 %v859, %v860
    %v862 = vrot.slane %v861, 2
    %v863 = vmax.f32 %v861, %v862
    %v864 = vrot.slane %v863, 1
    %v865 = vmax.f32 %v863, %v864
    %v866 = vsel %vm669, %v665, -inf
    %v867 = vrot.slane %v866, 4
    %v868 = vmax.f32 %v866, %v867
    %v869 = vrot.slane %v868, 2
    %v870 = vmax.f32 %v868, %v869
    %v871 = vrot.slane %v870, 1
    %v872 = vmax.f32 %v870, %v871
    %v873 = vsel %vm669, %v666, -inf
    %v874 = vrot.slane %v873, 4
    %v875 = vmax.f32 %v873, %v874
    %v876 = vrot.slane %v875, 2
    %v877 = vmax.f32 %v875, %v876
    %v878 = vrot.slane %v877, 1
    %v879 = vmax.f32 %v877, %v878
    %v880 = vsel %vm669, %v667, -inf
    %v881 = vrot.slane %v880, 4
    %v882 = vmax.f32 %v880, %v881
    %v883 = vrot.slane %v882, 2
    %v884 = vmax.f32 %v882, %v883
    %v885 = vrot.slane %v884, 1
    %v886 = vmax.f32 %v884, %v885
    %v887 = vsel %vm669, %v668, -inf
    %v888 = vrot.slane %v887, 4
    %v889 = vmax.f32 %v887, %v888
    %v890 = vrot.slane %v889, 2
    %v891 = vmax.f32 %v889, %v890
    %v892 = vrot.slane %v891, 1
    %v893 = vmax.f32 %v891, %v892
    %v894 = vmax.f32 %v676, 0.0
    %v895 = vmax.f32 %v683, 0.0
    %v896 = vmax.f32 %v690, 0.0
    %v897 = vmax.f32 %v697, 0.0
    %v898 = vmax.f32 %v704, 0.0
    %v899 = vmax.f32 %v711, 0.0
    %v900 = vmax.f32 %v718, 0.0
    %v901 = vmax.f32 %v725, 0.0
    %v902 = vmax.f32 %v732, 0.0
    %v903 = vmax.f32 %v739, 0.0
    %v904 = vmax.f32 %v746, 0.0
    %v905 = vmax.f32 %v753, 0.0
    %v906 = vmax.f32 %v760, 0.0
    %v907 = vmax.f32 %v767, 0.0
    %v908 = vmax.f32 %v774, 0.0
    %v909 = vmax.f32 %v781, 0.0
    %v910 = vmax.f32 %v788, 0.0
    %v911 = vmax.f32 %v795, 0.0
    %v912 = vmax.f32 %v802, 0.0
    %v913 = vmax.f32 %v809, 0.0
    %v914 = vmax.f32 %v816, 0.0
    %v915 = vmax.f32 %v823, 0.0
    %v916 = vmax.f32 %v830, 0.0
    %v917 = vmax.f32 %v837, 0.0
    %v918 = vmax.f32 %v844, 0.0
    %v919 = vmax.f32 %v851, 0.0
    %v920 = vmax.f32 %v858, 0.0
    %v921 = vmax.f32 %v865, 0.0
    %v922 = vmax.f32 %v872, 0.0
    %v923 = vmax.f32 %v879, 0.0
    %v924 = vmax.f32 %v886, 0.0
    %v925 = vmax.f32 %v893, 0.0
    %vm958 = vcmask 1041409
    %v959 = vsel %vm958, %v895, %v894
    %vm960 = vcmask 1042434
    %v961 = vsel %vm960, %v896, %v959
    %vm962 = vcmask 1043459
    %v963 = vsel %vm962, %v897, %v961
    %vm964 = vcmask 1044484
    %v965 = vsel %vm964, %v898, %v963
    %vm966 = vcmask 1045509
    %v967 = vsel %vm966, %v899, %v965
    %vm968 = vcmask 1046534
    %v969 = vsel %vm968, %v900, %v967
    %vm970 = vcmask 1047559
    %v971 = vsel %vm970, %v901, %v969
    %v972 = vsel %vm958, %v903, %v902
    %v973 = vsel %vm960, %v904, %v972
    %v974 = vsel %vm962, %v905, %v973
    %v975 = vsel %vm964, %v906, %v974
    %v976 = vsel %vm966, %v907, %v975
    %v977 = vsel %vm968, %v908, %v976
    %v978 = vsel %vm970, %v909, %v977
    %v979 = vsel %vm958, %v911, %v910
    %v980 = vsel %vm960, %v912, %v979
    %v981 = vsel %vm962, %v913, %v980
    %v982 = vsel %vm964, %v914, %v981
    %v983 = vsel %vm966, %v915, %v982
    %v984 = vsel %vm968, %v916, %v983
    %v985 = vsel %vm970, %v917, %v984
    %v986 = vsel %vm958, %v919, %v918
    %v987 = vsel %vm960, %v920, %v986
    %v988 = vsel %vm962, %v921, %v987
    %v989 = vsel %vm964, %v922, %v988
    %v990 = vsel %vm966, %v923, %v989
    %v991 = vsel %vm968, %v924, %v990
    %v992 = vsel %vm970, %v925, %v991
    %997 = vst.msk [vmem:[#allocation2] sm:$0xff] %vm669, %v971
    %998 = vst.msk [vmem:[#allocation2 + $0x8] sm:$0xff] %vm669, %v978
    %999 = vst.msk [vmem:[#allocation2 + $0x10] sm:$0xff] %vm669, %v985
    %1000 = vst.msk [vmem:[#allocation2 + $0x18] sm:$0xff] %vm669, %v992
    // Predicated region
    $region18: #{tpu_custom_call.1} parent=1 // pred_check
      _
    $region19: #{tpu_custom_call.1} parent=1 // pred_check_branch
      %1002 = sbr.rel (0) target = $region21
    $region20: #{tpu_custom_call.1} parent=1 // pred_region
      %s1004 = ssub.s32 512, 512
      %1005 = vsyncadd [#allocation3], %s1004
      %s1006 = sshll.u32 [#allocation2], 4
      %s1007 = int_to_ptr.vmem [resolvable:$true] %s1006
      %1012 = dma.vmem_to_hbm [thread:$0]  %s1007, 512, %s4, [#allocation3], 128, 128, 8
    $region21: #{tpu_custom_call.1} parent=1 // pred_fallthru
      _
    // Predicated region
    $region22: #{tpu_custom_call.1} parent=1 // pred_check
      _
    $region23: #{tpu_custom_call.1} parent=1 // pred_check_branch
      %1014 = sbr.rel (0) target = $region25
    $region24: #{tpu_custom_call.1} parent=1 // pred_region
      %1015 = dma.done [#allocation3], 512
    $region25: #{tpu_custom_call.1} parent=1 // pred_fallthru
      _
    %1016 = vsyncpa [#allocation3], 1

</llo_original>
